<compile_context>
chip_gen: v7x
topology: tpu7x:2x2x1
jax: 0.10.0
libtpu: 0.0.40
codegen_flags: <defaults>
</compile_context>

<pallas_src>
import functools

import jax
import jax.numpy as jnp
from jax.experimental import pallas as pl
from jax.experimental.pallas import tpu as pltpu


# ---------------------------------------------------------------------------
# Kernels
# ---------------------------------------------------------------------------
def _revin_norm_kernel(x_ref, w_ref, b_ref, y_ref, ctr_ref, std_ref,
                       *, eps, affine, subtract_last, seq_len):
    # x_ref: (bb, L, C) in the caller's dtype; w_ref/b_ref: (1, 1, C) f32.
    x = x_ref[...].astype(jnp.float32)               # f32 math even for bf16 I/O
    inv_len = 1.0 / float(seq_len)

    # Statistics over seq_len, matching torch.var(unbiased=False).
    mean = jnp.sum(x, axis=1, keepdims=True) * inv_len            # (bb, 1, C)
    xc = x - mean
    var = jnp.sum(xc * xc, axis=1, keepdims=True) * inv_len       # (bb, 1, C)
    stdev = jnp.sqrt(var + eps)                                   # torch parity
    inv_std = 1.0 / stdev                                         # tiny divide

    if subtract_last:
        center = x[:, seq_len - 1:seq_len, :]                     # x[:, -1:, :]
        y = (x - center) * inv_std
    else:
        center = mean
        y = xc * inv_std

    if affine:
        y = y * w_ref[...] + b_ref[...]

    y_ref[...] = y.astype(y_ref.dtype)
    ctr_ref[...] = center
    std_ref[...] = stdev


def _revin_denorm_kernel(x_ref, w_ref, b_ref, ctr_ref, std_ref, y_ref,
                         *, eps, affine):
    x = x_ref[...].astype(jnp.float32)
    if affine:
        # Exact reciprocal of the tiny (1,1,C) tensor, then broadcast-multiply
        # instead of a per-element divide over the whole (bb, L, C) block.
        inv_w = 1.0 / (w_ref[...] + eps * eps)
        x = (x - b_ref[...]) * inv_w
    y_ref[...] = (x * std_ref[...] + ctr_ref[...]).astype(y_ref.dtype)


# ---------------------------------------------------------------------------
# VMEM / tiling heuristics (generation-aware)
# ---------------------------------------------------------------------------
def _vmem_limit_bytes():
    """Scoped-VMEM limit: ~3/4 of physical, capped at 64 MiB.
    v5e/v6e (128 MiB physical) -> 64 MiB; v7x (64 MiB per TC) -> 48 MiB."""
    try:
        cap = int(pltpu.get_tpu_info().vmem_capacity_bytes)
    except Exception:
        cap = 128 * 1024 * 1024
    return int(min(cap - cap // 4, 64 * 1024 * 1024))


def _pick_block_bs(bs, seq_len, n_vars, itemsize, vmem_limit):
    """Batch-tile rows per grid step, sized against the VMEM budget.

    Budget model per batch row: double-buffered input + output tiles in the
    I/O dtype (4 * itemsize bytes/elem) plus ~3 tile-sized f32 temporaries the
    compiler may materialize inside the body (12 bytes/elem), with headroom.
    """
    headroom = 8 * 1024 * 1024
    per_batch = seq_len * n_vars * (4 * itemsize + 12)
    block_bs = max(1, (vmem_limit - headroom) // per_batch)
    # Keep >= 2 grid steps so v7x's two TensorCores are both used; on 1-TC
    # chips this only deepens the software pipeline.
    block_bs = min(block_bs, max(1, pl.cdiv(bs, 2)))
    return int(min(block_bs, bs))


def _compiler_params(vmem_limit):
    return pltpu.CompilerParams(
        dimension_semantics=("parallel",),
        vmem_limit_bytes=int(vmem_limit),
    )


# ---------------------------------------------------------------------------
# Wrappers
# ---------------------------------------------------------------------------
def revin_norm(x, affine_weight, affine_bias, *, eps=1e-5, affine=True,
               subtract_last=False, block_bs=None):
    """RevIN forward, mode='norm'. Returns (y, center, stdev)."""
    x = jnp.asarray(x)
    bs, seq_len, n_vars = x.shape
    vmem_limit = _vmem_limit_bytes()
    if block_bs is None:
        block_bs = _pick_block_bs(bs, seq_len, n_vars,
                                  jnp.dtype(x.dtype).itemsize, vmem_limit)
    grid = (pl.cdiv(bs, block_bs),)

    if affine_weight is None:
        affine_weight = jnp.ones((n_vars,), jnp.float32)
    if affine_bias is None:
        affine_bias = jnp.zeros((n_vars,), jnp.float32)
    w3 = jnp.asarray(affine_weight, jnp.float32).reshape(1, 1, n_vars)
    b3 = jnp.asarray(affine_bias, jnp.float32).reshape(1, 1, n_vars)

    x_spec = pl.BlockSpec((block_bs, seq_len, n_vars), lambda i: (i, 0, 0))
    p_spec = pl.BlockSpec((1, 1, n_vars), lambda i: (0, 0, 0))
    s_spec = pl.BlockSpec((block_bs, 1, n_vars), lambda i: (i, 0, 0))

    kern = functools.partial(_revin_norm_kernel, eps=float(eps), affine=affine,
                             subtract_last=subtract_last, seq_len=seq_len)

    y, center, stdev = pl.pallas_call(
        kern,
        out_shape=(
            jax.ShapeDtypeStruct((bs, seq_len, n_vars), x.dtype),   # normalized x
            jax.ShapeDtypeStruct((bs, 1, n_vars), jnp.float32),     # mean (or last)
            jax.ShapeDtypeStruct((bs, 1, n_vars), jnp.float32),     # stdev
        ),
        grid=grid,
        in_specs=[x_spec, p_spec, p_spec],
        out_specs=(x_spec, s_spec, s_spec),
        compiler_params=_compiler_params(vmem_limit),
    )(x, w3, b3)
    return y, center, stdev


def revin_denorm(x, affine_weight, affine_bias, center, stdev, *, eps=1e-5,
                 affine=True, block_bs=None):
    """RevIN forward, mode='denorm'. `center`/`stdev` come from revin_norm."""
    x = jnp.asarray(x)
    bs, seq_len, n_vars = x.shape
    vmem_limit = _vmem_limit_bytes()
    if block_bs is None:
        block_bs = _pick_block_bs(bs, seq_len, n_vars,
                                  jnp.dtype(x.dtype).itemsize, vmem_limit)
    grid = (pl.cdiv(bs, block_bs),)

    if affine_weight is None:
        affine_weight = jnp.ones((n_vars,), jnp.float32)
    if affine_bias is None:
        affine_bias = jnp.zeros((n_vars,), jnp.float32)
    w3 = jnp.asarray(affine_weight, jnp.float32).reshape(1, 1, n_vars)
    b3 = jnp.asarray(affine_bias, jnp.float32).reshape(1, 1, n_vars)

    x_spec = pl.BlockSpec((block_bs, seq_len, n_vars), lambda i: (i, 0, 0))
    p_spec = pl.BlockSpec((1, 1, n_vars), lambda i: (0, 0, 0))
    s_spec = pl.BlockSpec((block_bs, 1, n_vars), lambda i: (i, 0, 0))

    kern = functools.partial(_revin_denorm_kernel, eps=float(eps), affine=affine)

    y = pl.pallas_call(
        kern,
        out_shape=jax.ShapeDtypeStruct((bs, seq_len, n_vars), x.dtype),
        grid=grid,
        in_specs=[x_spec, p_spec, p_spec, s_spec, s_spec],
        out_specs=x_spec,
        compiler_params=_compiler_params(vmem_limit),
    )(x, w3, b3, jnp.asarray(center, jnp.float32), jnp.asarray(stdev, jnp.float32))
    return y


def revin_forward(x, affine_weight, affine_bias, mode, *, state=None,
                  eps=1e-5, affine=True, subtract_last=False):
    """Mirrors RevIN.forward(x, mode). norm returns (y, state); denorm needs state."""
    if mode == "norm":
        y, center, stdev = revin_norm(x, affine_weight, affine_bias, eps=eps,
                                      affine=affine, subtract_last=subtract_last)
        return y, (center, stdev)
    elif mode == "denorm":
        center, stdev = state
        return revin_denorm(x, affine_weight, affine_bias, center, stdev,
                            eps=eps, affine=affine)
    raise NotImplementedError(mode)
    # TODO(synk): a single batch instance's full (L, C) plane must fit in VMEM;
    # very long seq_len * n_vars needs an extra "arbitrary" seq_len grid axis
    # (running sum / sum-of-squares scratch) and, for n_vars << 128, wrapper-side
    # channel padding or a seq-on-lane layout to keep lanes dense.


# ---------------------------------------------------------------------------
# Demo / self-check
# ---------------------------------------------------------------------------
if __name__ == "__main__":
    # bs=5 deliberately exercises the cdiv-padded last batch block.
    bs, seq_len, n_vars = 5, 32, 128   # (batch, time, num_features) -- lane-dense C
    eps = 1e-5

    key = jax.random.PRNGKey(0)
    k_x, k_w, k_b = jax.random.split(key, 3)
    x = 2.0 * jax.random.normal(k_x, (bs, seq_len, n_vars), jnp.float32) + 0.5
    # Module inits weight=1, bias=0; use perturbed values to exercise the math.
    affine_weight = 1.0 + 0.1 * jax.random.uniform(k_w, (n_vars,), jnp.float32)
    affine_bias = 0.05 * jax.random.normal(k_b, (n_vars,), jnp.float32)

    # --- mode='norm' (f32 I/O) ---
    y, (center, stdev) = revin_forward(x, affine_weight, affine_bias, "norm", eps=eps)
    jax.block_until_ready((y, center, stdev))

    # Pure-JAX reference (torch semantics: unbiased=False variance).
    mean_ref = jnp.mean(x, axis=1, keepdims=True)
    var_ref = jnp.mean((x - mean_ref) ** 2, axis=1, keepdims=True)
    std_ref = jnp.sqrt(var_ref + eps)
    y_ref = (x - mean_ref) / std_ref * affine_weight + affine_bias
    assert bool(jnp.allclose(y, y_ref, rtol=1e-4, atol=1e-4))
    assert bool(jnp.allclose(center, mean_ref, rtol=1e-5, atol=1e-5))
    assert bool(jnp.allclose(stdev, std_ref, rtol=1e-5, atol=1e-5))

    # --- mode='denorm' round trip (f32) ---
    x_rec = revin_forward(y, affine_weight, affine_bias, "denorm",
                          state=(center, stdev), eps=eps)
    jax.block_until_ready(x_rec)
    assert bool(jnp.allclose(x_rec, x, rtol=1e-3, atol=1e-3))

    # --- subtract_last variant ---
    y2, (last, std2) = revin_forward(x, affine_weight, affine_bias, "norm",
                                     eps=eps, subtract_last=True)
    jax.block_until_ready((y2, last, std2))
    y2_ref = (x - x[:, -1:, :]) / std_ref * affine_weight + affine_bias
    assert bool(jnp.allclose(y2, y2_ref, rtol=1e-4, atol=1e-4))
    assert bool(jnp.allclose(last, x[:, -1:, :], rtol=1e-6, atol=1e-6))

    # --- bf16 I/O path (kernel keeps math in f32; I/O stays bf16) ---
    x_bf = x.astype(jnp.bfloat16)
    yb, (cb, sb) = revin_forward(x_bf, affine_weight, affine_bias, "norm", eps=eps)
    jax.block_until_ready((yb, cb, sb))
    assert yb.dtype == jnp.bfloat16 and cb.dtype == jnp.float32 and sb.dtype == jnp.float32
    xf = x_bf.astype(jnp.float32)
    mb = jnp.mean(xf, axis=1, keepdims=True)
    sbr = jnp.sqrt(jnp.mean((xf - mb) ** 2, axis=1, keepdims=True) + eps)
    yb_ref = (xf - mb) / sbr * affine_weight + affine_bias
    assert bool(jnp.allclose(yb.astype(jnp.float32), yb_ref, rtol=2e-2, atol=3e-2))
    xb_rec = revin_forward(yb, affine_weight, affine_bias, "denorm",
                           state=(cb, sb), eps=eps)
    jax.block_until_ready(xb_rec)
    assert xb_rec.dtype == jnp.bfloat16
    assert bool(jnp.allclose(xb_rec.astype(jnp.float32), xf, rtol=1e-1, atol=1.5e-1))

    assert bool(jnp.all(jnp.isfinite(y))) and bool(jnp.all(jnp.isfinite(x_rec)))
    print("KERNEL_OK")
</pallas_src>

<mosaic_0001>
module attributes {stable_mosaic.version = 11 : i64} {
  func.func @_revin_norm_kernel(%arg0: i32, %arg1: memref<3x32x128xf32, #tpu.memory_space<vmem>>, %arg2: memref<1x1x128xf32, #tpu.memory_space<vmem>>, %arg3: memref<1x1x128xf32, #tpu.memory_space<vmem>>, %arg4: memref<3x32x128xf32, #tpu.memory_space<vmem>>, %arg5: memref<3x1x128xf32, #tpu.memory_space<vmem>>, %arg6: memref<3x1x128xf32, #tpu.memory_space<vmem>>) attributes {dimension_semantics = [#tpu.dimension_semantics<parallel>], iteration_bounds = array<i64: 2>, scalar_prefetch = 0 : i64, scratch_operands = 0 : i64, tpu.core_type = #tpu.core_type<tc>, window_params = [{transform_indices = @transform_0, window_bounds = array<i64: 3, 32, 128>}, {pipeline_mode = #tpu.pipeline_mode<synchronous>, transform_indices = @transform_1, window_bounds = array<i64: 1, 1, 128>}, {pipeline_mode = #tpu.pipeline_mode<synchronous>, transform_indices = @transform_2, window_bounds = array<i64: 1, 1, 128>}, {transform_indices = @transform_3, window_bounds = array<i64: 3, 32, 128>}, {transform_indices = @transform_4, window_bounds = array<i64: 3, 1, 128>}, {transform_indices = @transform_5, window_bounds = array<i64: 3, 1, 128>}]} {
    %c0 = arith.constant 0 : index
    %c0_0 = arith.constant 0 : index
    %c0_1 = arith.constant 0 : index
    %0 = vector.load %arg1[%c0, %c0_0, %c0_1] : memref<3x32x128xf32, #tpu.memory_space<vmem>>, vector<3x32x128xf32>
    %cst = arith.constant dense<0.000000e+00> : vector<3x128xf32>
    %1 = vector.multi_reduction <add>, %0, %cst [1] : vector<3x32x128xf32> to vector<3x128xf32>
    %2 = vector.shape_cast %1 : vector<3x128xf32> to vector<3x1x128xf32>
    %cst_2 = arith.constant 3.125000e-02 : f32
    %3 = vector.broadcast %cst_2 : f32 to vector<3x1x128xf32>
    %4 = arith.mulf %2, %3 : vector<3x1x128xf32>
    %5 = vector.broadcast %4 : vector<3x1x128xf32> to vector<3x32x128xf32>
    %6 = arith.subf %0, %5 : vector<3x32x128xf32>
    %7 = arith.mulf %6, %6 : vector<3x32x128xf32>
    %cst_3 = arith.constant dense<0.000000e+00> : vector<3x128xf32>
    %8 = vector.multi_reduction <add>, %7, %cst_3 [1] : vector<3x32x128xf32> to vector<3x128xf32>
    %9 = vector.shape_cast %8 : vector<3x128xf32> to vector<3x1x128xf32>
    %cst_4 = arith.constant 3.125000e-02 : f32
    %10 = vector.broadcast %cst_4 : f32 to vector<3x1x128xf32>
    %11 = arith.mulf %9, %10 : vector<3x1x128xf32>
    %cst_5 = arith.constant 9.99999974E-6 : f32
    %12 = vector.broadcast %cst_5 : f32 to vector<3x1x128xf32>
    %13 = arith.addf %11, %12 : vector<3x1x128xf32>
    %14 = math.sqrt %13 : vector<3x1x128xf32>
    %cst_6 = arith.constant 1.000000e+00 : f32
    %15 = vector.broadcast %cst_6 : f32 to vector<3x1x128xf32>
    %16 = arith.divf %15, %14 : vector<3x1x128xf32>
    %17 = vector.broadcast %16 : vector<3x1x128xf32> to vector<3x32x128xf32>
    %18 = arith.mulf %6, %17 : vector<3x32x128xf32>
    %c0_7 = arith.constant 0 : index
    %c0_8 = arith.constant 0 : index
    %c0_9 = arith.constant 0 : index
    %19 = vector.load %arg2[%c0_7, %c0_8, %c0_9] : memref<1x1x128xf32, #tpu.memory_space<vmem>>, vector<1x1x128xf32>
    %20 = vector.broadcast %19 : vector<1x1x128xf32> to vector<3x32x128xf32>
    %21 = arith.mulf %18, %20 : vector<3x32x128xf32>
    %c0_10 = arith.constant 0 : index
    %c0_11 = arith.constant 0 : index
    %c0_12 = arith.constant 0 : index
    %22 = vector.load %arg3[%c0_10, %c0_11, %c0_12] : memref<1x1x128xf32, #tpu.memory_space<vmem>>, vector<1x1x128xf32>
    %23 = vector.broadcast %22 : vector<1x1x128xf32> to vector<3x32x128xf32>
    %24 = arith.addf %21, %23 : vector<3x32x128xf32>
    %c0_13 = arith.constant 0 : index
    %c0_14 = arith.constant 0 : index
    %c0_15 = arith.constant 0 : index
    %25 = vector.load %arg4[%c0_13, %c0_14, %c0_15] : memref<3x32x128xf32, #tpu.memory_space<vmem>>, vector<3x32x128xf32>
    tpu.vector_store %arg4[%c0_13, %c0_14, %c0_15], %24 {strides = array<i32>} : memref<3x32x128xf32, #tpu.memory_space<vmem>>, vector<3x32x128xf32>,
    %c0_16 = arith.constant 0 : index
    %c0_17 = arith.constant 0 : index
    %c0_18 = arith.constant 0 : index
    %26 = vector.load %arg5[%c0_16, %c0_17, %c0_18] : memref<3x1x128xf32, #tpu.memory_space<vmem>>, vector<3x1x128xf32>
    tpu.vector_store %arg5[%c0_16, %c0_17, %c0_18], %4 {strides = array<i32>} : memref<3x1x128xf32, #tpu.memory_space<vmem>>, vector<3x1x128xf32>,
    %c0_19 = arith.constant 0 : index
    %c0_20 = arith.constant 0 : index
    %c0_21 = arith.constant 0 : index
    %27 = vector.load %arg6[%c0_19, %c0_20, %c0_21] : memref<3x1x128xf32, #tpu.memory_space<vmem>>, vector<3x1x128xf32>
    tpu.vector_store %arg6[%c0_19, %c0_20, %c0_21], %14 {strides = array<i32>} : memref<3x1x128xf32, #tpu.memory_space<vmem>>, vector<3x1x128xf32>,
    return
  }
  func.func @transform_0(%arg0: i32) -> (i32, i32, i32) {
    %c0_i32 = arith.constant 0 : i32
    %c0_i32_0 = arith.constant 0 : i32
    %c0_i32_1 = arith.constant 0 : i32
    return %arg0, %c0_i32, %c0_i32_0 : i32, i32, i32
  }
  func.func @transform_1(%arg0: i32) -> (i32, i32, i32) {
    %c0_i32 = arith.constant 0 : i32
    %c0_i32_0 = arith.constant 0 : i32
    %c0_i32_1 = arith.constant 0 : i32
    %c0_i32_2 = arith.constant 0 : i32
    return %c0_i32, %c0_i32_0, %c0_i32_1 : i32, i32, i32
  }
  func.func @transform_2(%arg0: i32) -> (i32, i32, i32) {
    %c0_i32 = arith.constant 0 : i32
    %c0_i32_0 = arith.constant 0 : i32
    %c0_i32_1 = arith.constant 0 : i32
    %c0_i32_2 = arith.constant 0 : i32
    return %c0_i32, %c0_i32_0, %c0_i32_1 : i32, i32, i32
  }
  func.func @transform_3(%arg0: i32) -> (i32, i32, i32) {
    %c0_i32 = arith.constant 0 : i32
    %c0_i32_0 = arith.constant 0 : i32
    %c0_i32_1 = arith.constant 0 : i32
    return %arg0, %c0_i32, %c0_i32_0 : i32, i32, i32
  }
  func.func @transform_4(%arg0: i32) -> (i32, i32, i32) {
    %c0_i32 = arith.constant 0 : i32
    %c0_i32_0 = arith.constant 0 : i32
    %c0_i32_1 = arith.constant 0 : i32
    return %arg0, %c0_i32, %c0_i32_0 : i32, i32, i32
  }
  func.func @transform_5(%arg0: i32) -> (i32, i32, i32) {
    %c0_i32 = arith.constant 0 : i32
    %c0_i32_0 = arith.constant 0 : i32
    %c0_i32_1 = arith.constant 0 : i32
    return %arg0, %c0_i32, %c0_i32_0 : i32, i32, i32
  }
}

</mosaic_0001>

<llo_original>
// kernel: tpu_custom_call.1
$region0: #{tpu_custom_call.1}
  #allocation0 [shape = 'u32[]', space=smem, size = 0x4, offset = 0x4, fixed_abs, tag = 'smem constant byte address 0x4 - core index']
  #allocation1 [shape = 'u32[144,128]{1,0:T(1,128)}', space=vmem, size = 0x12000, scoped, tag = 'internal scratch']
  %s0 = inlined_call_operand.hbm [shape: f32[5,32,128], index: 0, kind: input, shape index: {}]
  %s1 = inlined_call_operand.hbm [shape: f32[1,1,128], index: 1, kind: input, shape index: {}]
  %s2 = inlined_call_operand.hbm [shape: f32[1,1,128], index: 2, kind: input, shape index: {}]
  %s3 = inlined_call_operand.hbm [shape: f32[5,32,128], index: 3, kind: output, shape index: {0}]
  %s4 = inlined_call_operand.hbm [shape: f32[5,1,128], index: 4, kind: output, shape index: {1}]
  %s5 = inlined_call_operand.hbm [shape: f32[5,1,128], index: 5, kind: output, shape index: {2}]
  %6 = xla_tuple %s3, %s4, %s5
  %s7 = sld [smem:[#allocation0]]
  $region73: #{tpu_custom_call.1} parent=0
    _
  %s9 = ssub.s32 1, %s7
  %s10 = scalar_select 0, %s9, %s7
  $region1: #{tpu_custom_call.1} parent=0
    #allocation2 [shape = 'u8[98304]{0}', space=vmem, size = 0x18000, scoped, tag = 'input window, operand 0']
    #allocation3 [shape = 's32[2]{0}', space=sflag, size = 0x8, scoped, tag = 'scoped memory for tpu_custom_call.1']
    #allocation4 [shape = 's32[2]{0}', space=sflag, size = 0x8, scoped, tag = 'scoped memory for tpu_custom_call.1']
    #allocation5 [shape = 'u8[512]{0}', space=vmem, size = 0x400, scoped, tag = 'input window, operand 1, single buffered']
    #allocation6 [shape = 's32[1]{0}', space=sflag, size = 0x4, scoped, tag = 'scoped memory for tpu_custom_call.1']
    #allocation7 [shape = 'u8[512]{0}', space=vmem, size = 0x400, scoped, tag = 'input window, operand 2, single buffered']
    #allocation8 [shape = 'u8[98304]{0}', space=vmem, size = 0x18000, scoped, tag = 'output window, operand 0']
    #allocation9 [shape = 'u8[3072]{0}', space=vmem, size = 0xc00, scoped, tag = 'output window, operand 1']
    #allocation10 [shape = 's32[2]{0}', space=sflag, size = 0x8, scoped, tag = 'scoped memory for tpu_custom_call.1']
    #allocation11 [shape = 'u8[3072]{0}', space=vmem, size = 0xc00, scoped, tag = 'output window, operand 2']
    %11 = vsyncpa [#allocation3], 0
    %s12 = scalar_lea.sflag [#allocation3], 1
    %13 = vsyncpa %s12, 0
    %14 = vsyncpa [#allocation6], 0
    %15 = vsyncpa [#allocation4], 0
    %s16 = scalar_lea.sflag [#allocation4], 1
    %17 = vsyncpa %s16, 0
    %18 = vsyncpa [#allocation10], 0
    %s19 = scalar_lea.sflag [#allocation10], 1
    %20 = vsyncpa %s19, 0
    loop: start=0, step=1, limit=4
    $region2: #{tpu_custom_call.1} parent=1 // loop_pre_header
      _
    $region3: #{tpu_custom_call.1} parent=1 // loop_header
      %s22 = sphi 0, %s26
      %p23 = scmp.ge.s32.totalorder %s22, 4
      %s32 = sphi 0, %s34
      %s35 = sphi 0, %s32
      %s36 = sphi 0, %s35
      %s52 = sphi 0, %s36
      %s56 = sphi 0, %s56
      %s58 = sphi 0, %s56
      %s59 = sphi 0, %s58
      %s73 = sphi 0, %s59
      %s77 = sphi 0, %s77
      %s79 = sphi 0, %s77
      %s80 = sphi 0, %s79
      %s94 = sphi 0, %s80
      %s100 = sphi 0, %s102
      %s103 = sphi 0, %s100
      %s104 = sphi 0, %s103
      %s120 = sphi 0, %s104
      %s126 = sphi 0, %s128
      %s129 = sphi 0, %s126
      %s130 = sphi 0, %s129
      %s146 = sphi 0, %s130
      %s152 = sphi 0, %s154
      %s155 = sphi 0, %s152
      %s156 = sphi 0, %s155
      %s172 = sphi 0, %s156
    $region4: #{tpu_custom_call.1} parent=1 // loop_header_branch
      %25 = sbr.rel (%p23) target = $region8
    $region5: #{tpu_custom_call.1} parent=1 // loop_body
      %s27 = ssub.s32 %s22, 1
      %s28 = ssub.s32 %s22, 2
      %s29 = sadd.s32 %s22, 1
      %s30 = ssub.s32 %s22, %s29
      %p31 = scmp.eq.s32.totalorder %s30, 0
      %s33 = sadd.s32 %s32, 1
      %s34 = scalar_select %p31, %s32, %s33
      %p37 = pneg %p31
      %p38 = scmp.eq.s32.totalorder %s22, 1
      %p39 = por %p37, %p38
      %p40 = scmp.ne.s32.totalorder %s32, %s35
      %p41 = scmp.eq.s32.totalorder %s22, 0
      %p42 = por %p40, %p41
      %p43 = scmp.ne.s32.totalorder %s32, %s35
      %p44 = scmp.eq.s32.totalorder %s27, 1
      %p45 = por %p43, %p44
      %p46 = scmp.ne.s32.totalorder %s35, %s36
      %p47 = scmp.eq.s32.totalorder %s27, 0
      %p48 = por %p46, %p47
      %p49 = scmp.ne.s32.totalorder %s35, %s36
      %p50 = scmp.eq.s32.totalorder %s28, 1
      %p51 = por %p49, %p50
      %p53 = scmp.ne.s32.totalorder %s36, %s52
      %p54 = scmp.eq.s32.totalorder %s28, 0
      %p55 = por %p53, %p54
      %s57 = sadd.s32 %s56, 1
      %p60 = scmp.eq.s32.totalorder %s22, 1
      %p61 = scmp.ne.s32.totalorder %s56, %s58
      %p62 = scmp.eq.s32.totalorder %s22, 0
      %p63 = por %p61, %p62
      %p64 = scmp.ne.s32.totalorder %s56, %s58
      %p65 = scmp.eq.s32.totalorder %s27, 1
      %p66 = por %p64, %p65
      %p67 = scmp.ne.s32.totalorder %s58, %s59
      %p68 = scmp.eq.s32.totalorder %s27, 0
      %p69 = por %p67, %p68
      %p70 = scmp.ne.s32.totalorder %s58, %s59
      %p71 = scmp.eq.s32.totalorder %s28, 1
      %p72 = por %p70, %p71
      %p74 = scmp.ne.s32.totalorder %s59, %s73
      %p75 = scmp.eq.s32.totalorder %s28, 0
      %p76 = por %p74, %p75
      %s78 = sadd.s32 %s77, 1
      %p81 = scmp.eq.s32.totalorder %s22, 1
      %p82 = scmp.ne.s32.totalorder %s77, %s79
      %p83 = scmp.eq.s32.totalorder %s22, 0
      %p84 = por %p82, %p83
      %p85 = scmp.ne.s32.totalorder %s77, %s79
      %p86 = scmp.eq.s32.totalorder %s27, 1
      %p87 = por %p85, %p86
      %p88 = scmp.ne.s32.totalorder %s79, %s80
      %p89 = scmp.eq.s32.totalorder %s27, 0
      %p90 = por %p88, %p89
      %p91 = scmp.ne.s32.totalorder %s79, %s80
      %p92 = scmp.eq.s32.totalorder %s28, 1
      %p93 = por %p91, %p92
      %p95 = scmp.ne.s32.totalorder %s80, %s94
      %p96 = scmp.eq.s32.totalorder %s28, 0
      %p97 = por %p95, %p96
      %s98 = ssub.s32 %s22, %s29
      %p99 = scmp.eq.s32.totalorder %s98, 0
      %s101 = sadd.s32 %s100, 1
      %s102 = scalar_select %p99, %s100, %s101
      %p105 = pneg %p99
      %p106 = scmp.eq.s32.totalorder %s22, 1
      %p107 = por %p105, %p106
      %p108 = scmp.ne.s32.totalorder %s100, %s103
      %p109 = scmp.eq.s32.totalorder %s22, 0
      %p110 = por %p108, %p109
      %p111 = scmp.ne.s32.totalorder %s100, %s103
      %p112 = scmp.eq.s32.totalorder %s27, 1
      %p113 = por %p111, %p112
      %p114 = scmp.ne.s32.totalorder %s103, %s104
      %p115 = scmp.eq.s32.totalorder %s27, 0
      %p116 = por %p114, %p115
      %p117 = scmp.ne.s32.totalorder %s103, %s104
      %p118 = scmp.eq.s32.totalorder %s28, 1
      %p119 = por %p117, %p118
      %p121 = scmp.ne.s32.totalorder %s104, %s120
      %p122 = scmp.eq.s32.totalorder %s28, 0
      %p123 = por %p121, %p122
      %s124 = ssub.s32 %s22, %s29
      %p125 = scmp.eq.s32.totalorder %s124, 0
      %s127 = sadd.s32 %s126, 1
      %s128 = scalar_select %p125, %s126, %s127
      %p131 = pneg %p125
      %p132 = scmp.eq.s32.totalorder %s22, 1
      %p133 = por %p131, %p132
      %p134 = scmp.ne.s32.totalorder %s126, %s129
      %p135 = scmp.eq.s32.totalorder %s22, 0
      %p136 = por %p134, %p135
      %p137 = scmp.ne.s32.totalorder %s126, %s129
      %p138 = scmp.eq.s32.totalorder %s27, 1
      %p139 = por %p137, %p138
      %p140 = scmp.ne.s32.totalorder %s129, %s130
      %p141 = scmp.eq.s32.totalorder %s27, 0
      %p142 = por %p140, %p141
      %p143 = scmp.ne.s32.totalorder %s129, %s130
      %p144 = scmp.eq.s32.totalorder %s28, 1
      %p145 = por %p143, %p144
      %p147 = scmp.ne.s32.totalorder %s130, %s146
      %p148 = scmp.eq.s32.totalorder %s28, 0
      %p149 = por %p147, %p148
      %s150 = ssub.s32 %s22, %s29
      %p151 = scmp.eq.s32.totalorder %s150, 0
      %s153 = sadd.s32 %s152, 1
      %s154 = scalar_select %p151, %s152, %s153
      %p157 = pneg %p151
      %p158 = scmp.eq.s32.totalorder %s22, 1
      %p159 = por %p157, %p158
      %p160 = scmp.ne.s32.totalorder %s152, %s155
      %p161 = scmp.eq.s32.totalorder %s22, 0
      %p162 = por %p160, %p161
      %p163 = scmp.ne.s32.totalorder %s152, %s155
      %p164 = scmp.eq.s32.totalorder %s27, 1
      %p165 = por %p163, %p164
      %p166 = scmp.ne.s32.totalorder %s155, %s156
      %p167 = scmp.eq.s32.totalorder %s27, 0
      %p168 = por %p166, %p167
      %p169 = scmp.ne.s32.totalorder %s155, %s156
      %p170 = scmp.eq.s32.totalorder %s28, 1
      %p171 = por %p169, %p170
      %p173 = scmp.ne.s32.totalorder %s156, %s172
      %p174 = scmp.eq.s32.totalorder %s28, 0
      %p175 = por %p173, %p174
      %p176 = scmp.le.s32.totalorder 1, %s22
      %p177 = scmp.lt.s32.totalorder %s22, 3
      %p178 = pnand %p176, %p177
      %p179 = pneg %p178
      // Predicated region
      $region9: #{tpu_custom_call.1} parent=5 // pred_check
        _
      $region10: #{tpu_custom_call.1} parent=5 // pred_check_branch
        %181 = sbr.rel (%p178) target = $region12
      $region11: #{tpu_custom_call.1} parent=5 // pred_region
        %s182 = ssub.s32 %s22, 1
        // Predicated region
        $region13: #{tpu_custom_call.1} parent=11 // pred_check
          %p183 = pneg %p69
        $region14: #{tpu_custom_call.1} parent=11 // pred_check_branch
          %185 = sbr.rel (%p183) target = $region16
        $region15: #{tpu_custom_call.1} parent=11 // pred_region
          %s187 = ssub.s32 16, 16
          %188 = vsyncadd [#allocation6], %s187
          %s190 = sshll.u32 [#allocation5], 4
          %s191 = int_to_ptr.vmem [resolvable:$true] %s190
          %193 = dma.hbm_to_vmem [thread:$0]  %s1, 16, %s191, [#allocation6]
        $region16: #{tpu_custom_call.1} parent=11 // pred_fallthru
          _
        // Predicated region
        $region17: #{tpu_custom_call.1} parent=11 // pred_check
          %p194 = pneg %p90
        $region18: #{tpu_custom_call.1} parent=11 // pred_check_branch
          %196 = sbr.rel (%p194) target = $region20
        $region19: #{tpu_custom_call.1} parent=11 // pred_region
          %s198 = ssub.s32 16, 16
          %199 = vsyncadd [#allocation6], %s198
          %s201 = sshll.u32 [#allocation7], 4
          %s202 = int_to_ptr.vmem [resolvable:$true] %s201
          %204 = dma.hbm_to_vmem [thread:$0]  %s2, 16, %s202, [#allocation6]
        $region20: #{tpu_custom_call.1} parent=11 // pred_fallthru
          _
      $region12: #{tpu_custom_call.1} parent=5 // pred_fallthru
        _
      %p205 = scmp.lt.s32.totalorder %s22, 2
      // Predicated region
      $region21: #{tpu_custom_call.1} parent=5 // pred_check
        %p206 = pneg %p205
      $region22: #{tpu_custom_call.1} parent=5 // pred_check_branch
        %208 = sbr.rel (%p206) target = $region24
      $region23: #{tpu_custom_call.1} parent=5 // pred_region
        // Predicated region
        $region25: #{tpu_custom_call.1} parent=23 // pred_check
          %p209 = pneg %p42
        $region26: #{tpu_custom_call.1} parent=23 // pred_check_branch
          %211 = sbr.rel (%p209) target = $region28
        $region27: #{tpu_custom_call.1} parent=23 // pred_region
          %s212 = sand.u32 %s32, 1
          %s213 = scalar_lea.sflag [#allocation3], %s212
          %s214 = sand.u32 %s32, 1
          %s215 = smul.addr %s214, 96
          %s216 = scalar_lea.vmem [#allocation2], %s215
          %s217 = smul.u32 3, %s22
          %s218 = ssub.s32 5, %s217
          %p219 = scmp.lt.s32.totalorder %s218, 3
          %s220 = scalar_select %p219, %s218, 3
          %s221 = smul.u32 128, %s220
          %s222 = smul.u32 %s221, 4
          %s224 = ssub.s32 1536, %s222
          %225 = vsyncadd %s213, %s224
          %p226 = scmp.ne.s32.totalorder 0, %s222
          %s227 = smul.addr %s217, 4
          %s228 = smul.addr %s227, 128
          %s229 = scalar_lea.hbm %s0, %s228
          %s230 = smul.u32 %s220, 4
          %s231 = smul.u32 8, %s230
          %s232 = sshll.u32 %s216, 4
          %s233 = int_to_ptr.vmem [resolvable:$true] %s232
          %s234 = sshll.u32 %s231, 4
          %238 = dma.hbm_to_vmem [thread:$0]  (%p226), %s229, %s234, %s233, %s213, 128, 128, 8
        $region28: #{tpu_custom_call.1} parent=23 // pred_fallthru
          _
      $region24: #{tpu_custom_call.1} parent=5 // pred_fallthru
        _
      %p239 = scmp.le.s32.totalorder 1, %s22
      %p240 = scmp.lt.s32.totalorder %s22, 3
      %p241 = pnand %p239, %p240
      %p242 = pneg %p241
      // Predicated region
      $region29: #{tpu_custom_call.1} parent=5 // pred_check
        _
      $region30: #{tpu_custom_call.1} parent=5 // pred_check_branch
        %244 = sbr.rel (%p241) target = $region32
      $region31: #{tpu_custom_call.1} parent=5 // pred_region
        %s245 = ssub.s32 %s22, 1
        %s246 = sand.u32 %s35, 1
        %s247 = scalar_lea.sflag [#allocation3], %s246
        %s248 = sand.u32 %s35, 1
        %s249 = smul.addr %s248, 96
        %s250 = scalar_lea.vmem [#allocation2], %s249
        // Predicated region
        $region33: #{tpu_custom_call.1} parent=31 // pred_check
          %p251 = pneg %p48
        $region34: #{tpu_custom_call.1} parent=31 // pred_check_branch
          %253 = sbr.rel (%p251) target = $region36
        $region35: #{tpu_custom_call.1} parent=31 // pred_region
          %254 = dma.done %s247, 1536
        $region36: #{tpu_custom_call.1} parent=31 // pred_fallthru
          _
        // Predicated region
        $region37: #{tpu_custom_call.1} parent=31 // pred_check
          %p255 = pneg %p69
        $region38: #{tpu_custom_call.1} parent=31 // pred_check_branch
          %257 = sbr.rel (%p255) target = $region40
        $region39: #{tpu_custom_call.1} parent=31 // pred_region
          %258 = dma.done [#allocation6], 16
        $region40: #{tpu_custom_call.1} parent=31 // pred_fallthru
          _
        // Predicated region
        $region41: #{tpu_custom_call.1} parent=31 // pred_check
          %p259 = pneg %p90
        $region42: #{tpu_custom_call.1} parent=31 // pred_check_branch
          %261 = sbr.rel (%p259) target = $region44
        $region43: #{tpu_custom_call.1} parent=31 // pred_region
          %262 = dma.done [#allocation6], 16
        $region44: #{tpu_custom_call.1} parent=31 // pred_fallthru
          _
        %s263 = sand.u32 %s35, 1
        %s264 = scalar_lea.sflag [#allocation3], %s263
        %s265 = sand.u32 %s35, 1
        %s266 = smul.addr %s265, 96
        %s267 = scalar_lea.vmem [#allocation2], %s266
        %p268 = pneg %p48
        %p269 = pneg %p45
        %p270 = pneg %p69
        %p271 = pneg %p66
        %p272 = pneg %p90
        %p273 = pneg %p87
        %p274 = pneg %p116
        %p275 = pneg %p113
        %s276 = sand.u32 %s103, 1
        %s277 = scalar_lea.sflag [#allocation4], %s276
        %s278 = sand.u32 %s103, 1
        %s279 = smul.addr %s278, 96
        %s280 = scalar_lea.vmem [#allocation8], %s279
        %p281 = pneg %p142
        %p282 = pneg %p139
        %s283 = sand.u32 %s27, 1
        %s284 = scalar_lea.sflag [#allocation10], %s283
        %s285 = sand.u32 %s129, 1
        %s286 = smul.addr %s285, 3
        %s287 = scalar_lea.vmem [#allocation9], %s286
        %p288 = pneg %p168
        %p289 = pneg %p165
        %s290 = sand.u32 %s27, 1
        %s291 = scalar_lea.sflag [#allocation10], %s290
        %s292 = sand.u32 %s155, 1
        %s293 = smul.addr %s292, 3
        %s294 = scalar_lea.vmem [#allocation11], %s293
        %s295 = smul.u32 3, %s27
        %s296 = ssub.s32 5, %s295
        %p297 = scmp.lt.s32.totalorder %s296, 3
        %s298 = scalar_select %p297, %s296, 3
        %s299 = smul.u32 128, %s298
        %s300 = smul.u32 %s299, 4
        %s301 = smul.u32 3, %s27
        %s302 = ssub.s32 5, %s301
        %p303 = scmp.lt.s32.totalorder %s302, 3
        %s304 = scalar_select %p303, %s302, 3
        %s305 = smul.u32 128, %s304
        %s306 = smul.u32 %s305, 4
        %s307 = smul.u32 3, %s27
        %s308 = ssub.s32 5, %s307
        %p309 = scmp.lt.s32.totalorder %s308, 3
        %s310 = scalar_select %p309, %s308, 3
        %s311 = smul.u32 16, %s310
        %s312 = smul.u32 3, %s27
        %s313 = ssub.s32 5, %s312
        %p314 = scmp.lt.s32.totalorder %s313, 3
        %s315 = scalar_select %p314, %s313, 3
        %s316 = smul.u32 16, %s315
        %v317 = vld [vmem:[%s250] sm:$0xff]
        %v318 = vld [vmem:[%s250 + $0x8] sm:$0xff]
        %v319 = vld [vmem:[%s250 + $0x10] sm:$0xff]
        %v320 = vld [vmem:[%s250 + $0x18] sm:$0xff]
        %v321 = vld [vmem:[%s250 + $0x20] sm:$0xff]
        %v322 = vld [vmem:[%s250 + $0x28] sm:$0xff]
        %v323 = vld [vmem:[%s250 + $0x30] sm:$0xff]
        %v324 = vld [vmem:[%s250 + $0x38] sm:$0xff]
        %v325 = vld [vmem:[%s250 + $0x40] sm:$0xff]
        %v326 = vld [vmem:[%s250 + $0x48] sm:$0xff]
        %v327 = vld [vmem:[%s250 + $0x50] sm:$0xff]
        %v328 = vld [vmem:[%s250 + $0x58] sm:$0xff]
        %v329 = vadd.f32 %v317, %v318
        %v330 = vadd.f32 %v329, %v319
        %v331 = vadd.f32 %v330, %v320
        %v332 = vrot.slane %v331, 4
        %v333 = vadd.f32 %v331, %v332
        %v334 = vrot.slane %v333, 2
        %v335 = vadd.f32 %v333, %v334
        %v336 = vrot.slane %v335, 1
        %v337 = vadd.f32 %v335, %v336
        %v338 = vadd.f32 %v321, %v322
        %v339 = vadd.f32 %v338, %v323
        %v340 = vadd.f32 %v339, %v324
        %v341 = vrot.slane %v340, 4
        %v342 = vadd.f32 %v340, %v341
        %v343 = vrot.slane %v342, 2
        %v344 = vadd.f32 %v342, %v343
        %v345 = vrot.slane %v344, 1
        %v346 = vadd.f32 %v344, %v345
        %v347 = vadd.f32 %v325, %v326
        %v348 = vadd.f32 %v347, %v327
        %v349 = vadd.f32 %v348, %v328
        %v350 = vrot.slane %v349, 4
        %v351 = vadd.f32 %v349, %v350
        %v352 = vrot.slane %v351, 2
        %v353 = vadd.f32 %v351, %v352
        %v354 = vrot.slane %v353, 1
        %v355 = vadd.f32 %v353, %v354
        %v356 = vmul.f32 %v337, 0.03125
        %v357 = vmul.f32 %v346, 0.03125
        %v358 = vmul.f32 %v355, 0.03125
        %v359 = vsub.f32 %v317, %v356
        %v360 = vsub.f32 %v318, %v356
        %v361 = vsub.f32 %v319, %v356
        %v362 = vsub.f32 %v320, %v356
        %v363 = vsub.f32 %v321, %v357
        %v364 = vsub.f32 %v322, %v357
        %v365 = vsub.f32 %v323, %v357
        %v366 = vsub.f32 %v324, %v357
        %v367 = vsub.f32 %v325, %v358
        %v368 = vsub.f32 %v326, %v358
        %v369 = vsub.f32 %v327, %v358
        %v370 = vsub.f32 %v328, %v358
        %v371 = vmul.f32 %v359, %v359
        %v372 = vmul.f32 %v360, %v360
        %v373 = vmul.f32 %v361, %v361
        %v374 = vmul.f32 %v362, %v362
        %v375 = vmul.f32 %v363, %v363
        %v376 = vmul.f32 %v364, %v364
        %v377 = vmul.f32 %v365, %v365
        %v378 = vmul.f32 %v366, %v366
        %v379 = vmul.f32 %v367, %v367
        %v380 = vmul.f32 %v368, %v368
        %v381 = vmul.f32 %v369, %v369
        %v382 = vmul.f32 %v370, %v370
        %v383 = vadd.f32 %v371, %v372
        %v384 = vadd.f32 %v383, %v373
        %v385 = vadd.f32 %v384, %v374
        %v386 = vrot.slane %v385, 4
        %v387 = vadd.f32 %v385, %v386
        %v388 = vrot.slane %v387, 2
        %v389 = vadd.f32 %v387, %v388
        %v390 = vrot.slane %v389, 1
        %v391 = vadd.f32 %v389, %v390
        %v392 = vadd.f32 %v375, %v376
        %v393 = vadd.f32 %v392, %v377
        %v394 = vadd.f32 %v393, %v378
        %v395 = vrot.slane %v394, 4
        %v396 = vadd.f32 %v394, %v395
        %v397 = vrot.slane %v396, 2
        %v398 = vadd.f32 %v396, %v397
        %v399 = vrot.slane %v398, 1
        %v400 = vadd.f32 %v398, %v399
        %v401 = vadd.f32 %v379, %v380
        %v402 = vadd.f32 %v401, %v381
        %v403 = vadd.f32 %v402, %v382
        %v404 = vrot.slane %v403, 4
        %v405 = vadd.f32 %v403, %v404
        %v406 = vrot.slane %v405, 2
        %v407 = vadd.f32 %v405, %v406
        %v408 = vrot.slane %v407, 1
        %v409 = vadd.f32 %v407, %v408
        %v410 = vmul.f32 %v391, 0.03125
        %v411 = vmul.f32 %v400, 0.03125
        %v412 = vmul.f32 %v409, 0.03125
        %v413 = vadd.f32 %v410, 1e-05
        %v414 = vadd.f32 %v411, 1e-05
        %v415 = vadd.f32 %v412, 1e-05
        %v416 = vrsqrt.pop %v413
        %v417 = vmul.f32 %v413, %v416
        %vm418 = vcmp.eq.f32.partialorder %v413, inf
        %v419 = vsel %vm418, %v413, %v417
        %vm420 = vcmp.eq.f32.partialorder %v413, 0.0
        %v421 = vand.u32 %v413, 2147483648
        %v422 = vsel %vm420, %v421, %v419
        %v423 = vrsqrt.pop %v414
        %v424 = vmul.f32 %v414, %v423
        %vm425 = vcmp.eq.f32.partialorder %v414, inf
        %v426 = vsel %vm425, %v414, %v424
        %vm427 = vcmp.eq.f32.partialorder %v414, 0.0
        %v428 = vand.u32 %v414, 2147483648
        %v429 = vsel %vm427, %v428, %v426
        %v430 = vrsqrt.pop %v415
        %v431 = vmul.f32 %v415, %v430
        %vm432 = vcmp.eq.f32.partialorder %v415, inf
        %v433 = vsel %vm432, %v415, %v431
        %vm434 = vcmp.eq.f32.partialorder %v415, 0.0
        %v435 = vand.u32 %v415, 2147483648
        %v436 = vsel %vm434, %v435, %v433
        %v437 = vrcp.pop %v422
        %v438 = vmul.f32 1.0, %v437
        %v439 = vrcp.pop %v429
        %v440 = vmul.f32 1.0, %v439
        %v441 = vrcp.pop %v436
        %v442 = vmul.f32 1.0, %v441
        %v443 = vmul.f32 %v359, %v438
        %v444 = vmul.f32 %v360, %v438
        %v445 = vmul.f32 %v361, %v438
        %v446 = vmul.f32 %v362, %v438
        %v447 = vmul.f32 %v363, %v440
        %v448 = vmul.f32 %v364, %v440
        %v449 = vmul.f32 %v365, %v440
        %v450 = vmul.f32 %v366, %v440
        %v451 = vmul.f32 %v367, %v442
        %v452 = vmul.f32 %v368, %v442
        %v453 = vmul.f32 %v369, %v442
        %v454 = vmul.f32 %v370, %v442
        %v455 = vld [vmem:[#allocation5] sm:$0x1]
        %v457 = vlaneseq
        %v458 = vshrl.u32 %v457, 7
        %v459 = vsub.s32 0, %v458
        %v460 = vrot.slane %v455, %v459
        %v462 = vmul.f32 %v443, %v460
        %v463 = vmul.f32 %v444, %v460
        %v464 = vmul.f32 %v445, %v460
        %v465 = vmul.f32 %v446, %v460
        %v466 = vmul.f32 %v447, %v460
        %v467 = vmul.f32 %v448, %v460
        %v468 = vmul.f32 %v449, %v460
        %v469 = vmul.f32 %v450, %v460
        %v470 = vmul.f32 %v451, %v460
        %v471 = vmul.f32 %v452, %v460
        %v472 = vmul.f32 %v453, %v460
        %v473 = vmul.f32 %v454, %v460
        %v474 = vld [vmem:[#allocation7] sm:$0x1]
        %v476 = vlaneseq
        %v477 = vshrl.u32 %v476, 7
        %v478 = vsub.s32 0, %v477
        %v479 = vrot.slane %v474, %v478
        %v481 = vadd.f32 %v462, %v479
        %v482 = vadd.f32 %v463, %v479
        %v483 = vadd.f32 %v464, %v479
        %v484 = vadd.f32 %v465, %v479
        %v485 = vadd.f32 %v466, %v479
        %v486 = vadd.f32 %v467, %v479
        %v487 = vadd.f32 %v468, %v479
        %v488 = vadd.f32 %v469, %v479
        %v489 = vadd.f32 %v470, %v479
        %v490 = vadd.f32 %v471, %v479
        %v491 = vadd.f32 %v472, %v479
        %v492 = vadd.f32 %v473, %v479
        %493 = vst [vmem:[%s280] sm:$0xff] %v481
        %494 = vst [vmem:[%s280 + $0x8] sm:$0xff] %v482
        %495 = vst [vmem:[%s280 + $0x10] sm:$0xff] %v483
        %496 = vst [vmem:[%s280 + $0x18] sm:$0xff] %v484
        %497 = vst [vmem:[%s280 + $0x20] sm:$0xff] %v485
        %498 = vst [vmem:[%s280 + $0x28] sm:$0xff] %v486
        %499 = vst [vmem:[%s280 + $0x30] sm:$0xff] %v487
        %500 = vst [vmem:[%s280 + $0x38] sm:$0xff] %v488
        %501 = vst [vmem:[%s280 + $0x40] sm:$0xff] %v489
        %502 = vst [vmem:[%s280 + $0x48] sm:$0xff] %v490
        %503 = vst [vmem:[%s280 + $0x50] sm:$0xff] %v491
        %504 = vst [vmem:[%s280 + $0x58] sm:$0xff] %v492
        %505 = vst [vmem:[%s287] sm:$0x1] %v356
        %506 = vst [vmem:[%s287 + $0x1] sm:$0x1] %v357
        %507 = vst [vmem:[%s287 + $0x2] sm:$0x1] %v358
        %508 = vst [vmem:[%s294] sm:$0x1] %v422
        %509 = vst [vmem:[%s294 + $0x1] sm:$0x1] %v429
        %510 = vst [vmem:[%s294 + $0x2] sm:$0x1] %v436
        %s511 = sand.u32 %s103, 1
        %s512 = scalar_lea.sflag [#allocation4], %s511
        %s513 = sand.u32 %s103, 1
        %s514 = smul.addr %s513, 96
        %s515 = scalar_lea.vmem [#allocation8], %s514
        %s516 = sand.u32 %s27, 1
        %s517 = scalar_lea.sflag [#allocation10], %s516
        %s518 = sand.u32 %s129, 1
        %s519 = smul.addr %s518, 3
        %s520 = scalar_lea.vmem [#allocation9], %s519
        %s521 = sand.u32 %s27, 1
        %s522 = scalar_lea.sflag [#allocation10], %s521
        %s523 = sand.u32 %s155, 1
        %s524 = smul.addr %s523, 3
        %s525 = scalar_lea.vmem [#allocation11], %s524
        // Predicated region
        $region45: #{tpu_custom_call.1} parent=31 // pred_check
          %p526 = pneg %p113
        $region46: #{tpu_custom_call.1} parent=31 // pred_check_branch
          %528 = sbr.rel (%p526) target = $region48
        $region47: #{tpu_custom_call.1} parent=31 // pred_region
          %s529 = smul.u32 3, %s27
          %s530 = ssub.s32 5, %s529
          %p531 = scmp.lt.s32.totalorder %s530, 3
          %s532 = scalar_select %p531, %s530, 3
          %s533 = smul.u32 128, %s532
          %s534 = smul.u32 %s533, 4
          %s536 = ssub.s32 1536, %s534
          %537 = vsyncadd %s512, %s536
          %p538 = scmp.ne.s32.totalorder 0, %s534
          %s539 = smul.addr %s529, 4
          %s540 = smul.addr %s539, 128
          %s541 = scalar_lea.hbm %s3, %s540
          %s542 = smul.u32 %s532, 4
          %s543 = smul.u32 8, %s542
          %s544 = sshll.u32 %s515, 4
          %s545 = int_to_ptr.vmem [resolvable:$true] %s544
          %s546 = sshll.u32 %s543, 4
          %550 = dma.vmem_to_hbm [thread:$0]  (%p538), %s545, %s546, %s541, %s512, 128, 128, 8
        $region48: #{tpu_custom_call.1} parent=31 // pred_fallthru
          _
        // Predicated region
        $region49: #{tpu_custom_call.1} parent=31 // pred_check
          %p551 = pneg %p139
        $region50: #{tpu_custom_call.1} parent=31 // pred_check_branch
          %553 = sbr.rel (%p551) target = $region52
        $region51: #{tpu_custom_call.1} parent=31 // pred_region
          %s554 = smul.u32 3, %s27
          %s555 = ssub.s32 5, %s554
          %p556 = scmp.lt.s32.totalorder %s555, 3
          %s557 = scalar_select %p556, %s555, 3
          %s558 = smul.u32 16, %s557
          %s560 = ssub.s32 48, %s558
          %561 = vsyncadd %s517, %s560
          %p562 = scmp.ne.s32.totalorder 0, %s558
          %s563 = smul.addr %s554, 16
          %s564 = scalar_lea.hbm %s4, %s563
          %s565 = sshll.u32 %s520, 4
          %s566 = int_to_ptr.vmem [resolvable:$true] %s565
          %s567 = sshll.u32 %s557, 4
          %571 = dma.vmem_to_hbm [thread:$0]  (%p562), %s566, %s567, %s564, %s517, 16, 16, 1
        $region52: #{tpu_custom_call.1} parent=31 // pred_fallthru
          _
        // Predicated region
        $region53: #{tpu_custom_call.1} parent=31 // pred_check
          %p572 = pneg %p165
        $region54: #{tpu_custom_call.1} parent=31 // pred_check_branch
          %574 = sbr.rel (%p572) target = $region56
        $region55: #{tpu_custom_call.1} parent=31 // pred_region
          %s575 = smul.u32 3, %s27
          %s576 = ssub.s32 5, %s575
          %p577 = scmp.lt.s32.totalorder %s576, 3
          %s578 = scalar_select %p577, %s576, 3
          %s579 = smul.u32 16, %s578
          %s581 = ssub.s32 48, %s579
          %582 = vsyncadd %s522, %s581
          %p583 = scmp.ne.s32.totalorder 0, %s579
          %s584 = smul.addr %s575, 16
          %s585 = scalar_lea.hbm %s5, %s584
          %s586 = sshll.u32 %s525, 4
          %s587 = int_to_ptr.vmem [resolvable:$true] %s586
          %s588 = sshll.u32 %s578, 4
          %592 = dma.vmem_to_hbm [thread:$0]  (%p583), %s587, %s588, %s585, %s522, 16, 16, 1
        $region56: #{tpu_custom_call.1} parent=31 // pred_fallthru
          _
      $region32: #{tpu_custom_call.1} parent=5 // pred_fallthru
        _
      %p593 = scmp.le.s32.totalorder 2, %s22
      // Predicated region
      $region57: #{tpu_custom_call.1} parent=5 // pred_check
        %p594 = pneg %p593
      $region58: #{tpu_custom_call.1} parent=5 // pred_check_branch
        %596 = sbr.rel (%p594) target = $region60
      $region59: #{tpu_custom_call.1} parent=5 // pred_region
        %s597 = ssub.s32 %s22, 2
        // Predicated region
        $region61: #{tpu_custom_call.1} parent=59 // pred_check
          %p598 = pneg %p119
        $region62: #{tpu_custom_call.1} parent=59 // pred_check_branch
          %600 = sbr.rel (%p598) target = $region64
        $region63: #{tpu_custom_call.1} parent=59 // pred_region
          %s601 = sand.u32 %s104, 1
          %s602 = scalar_lea.sflag [#allocation4], %s601
          %s603 = sand.u32 %s104, 1
          %s604 = smul.addr %s603, 96
          %s605 = scalar_lea.vmem [#allocation8], %s604
          %606 = dma.done %s602, 1536
        $region64: #{tpu_custom_call.1} parent=59 // pred_fallthru
          _
        // Predicated region
        $region65: #{tpu_custom_call.1} parent=59 // pred_check
          %p607 = pneg %p145
        $region66: #{tpu_custom_call.1} parent=59 // pred_check_branch
          %609 = sbr.rel (%p607) target = $region68
        $region67: #{tpu_custom_call.1} parent=59 // pred_region
          %s610 = sand.u32 %s28, 1
          %s611 = scalar_lea.sflag [#allocation10], %s610
          %s612 = sand.u32 %s130, 1
          %s613 = smul.addr %s612, 3
          %s614 = scalar_lea.vmem [#allocation9], %s613
          %615 = dma.done %s611, 48
        $region68: #{tpu_custom_call.1} parent=59 // pred_fallthru
          _
        // Predicated region
        $region69: #{tpu_custom_call.1} parent=59 // pred_check
          %p616 = pneg %p171
        $region70: #{tpu_custom_call.1} parent=59 // pred_check_branch
          %618 = sbr.rel (%p616) target = $region72
        $region71: #{tpu_custom_call.1} parent=59 // pred_region
          %s619 = sand.u32 %s28, 1
          %s620 = scalar_lea.sflag [#allocation10], %s619
          %s621 = sand.u32 %s156, 1
          %s622 = smul.addr %s621, 3
          %s623 = scalar_lea.vmem [#allocation11], %s622
          %624 = dma.done %s620, 48
        $region72: #{tpu_custom_call.1} parent=59 // pred_fallthru
          _
      $region60: #{tpu_custom_call.1} parent=5 // pred_fallthru
        _
    $region6: #{tpu_custom_call.1} parent=1 // loop_footer
      %s26 = sadd.s32 1, %s22
    $region7: #{tpu_custom_call.1} parent=1 // loop_footer_branch
      %21 = sbr.rel target = $region3
    $region8: #{tpu_custom_call.1} parent=1 // loop_exit
      _
    %625 = vsyncpa [#allocation3], 1
    %s626 = scalar_lea.sflag [#allocation3], 1
    %627 = vsyncpa %s626, 1
    %628 = vsyncpa [#allocation6], 1
    %629 = vsyncpa [#allocation4], 1
    %s630 = scalar_lea.sflag [#allocation4], 1
    %631 = vsyncpa %s630, 1
    %632 = vsyncpa [#allocation10], 1
    %s633 = scalar_lea.sflag [#allocation10], 1
    %634 = vsyncpa %s633, 1

</llo_original>
